<compile_context>
chip_gen: v5e
topology: v5e:2x2
jax: 0.10.0
libtpu: 0.0.40
codegen_flags: <defaults>
</compile_context>

<pallas_src>
import functools

import jax
import jax.numpy as jnp
from jax.experimental import pallas as pl
from jax.experimental.pallas import tpu as pltpu

VOCAB_SIZE = 27          # len('abcdefghijklmnopqrstuvwxyz ')
HIDDEN_SIZE = 16


def _round_up(x, m):
    return ((x + m - 1) // m) * m


def _autoencoder_kernel(x_ref, we_ref, be_ref, wf_ref, bf_ref,
                        dec_ref, enc_ref):
    """Fused encoder + (algebraically folded) decoder on one batch tile.

    x_ref  : [TB, V]  input tile (streamed per grid step)
    we_ref : [V, H]   encoder weight, pre-transposed (VMEM-resident)
    be_ref : [1, H]   encoder bias
    wf_ref : [V, V]   fused decoder weight  We^T @ Wd^T   (VMEM-resident)
    bf_ref : [1, V]   fused decoder bias    b_enc @ Wd^T + b_dec
    dec_ref: [TB, V]  decoded output (exact width -> minimal HBM writeback)
    enc_ref: [TB, H]  encoded output (exact width)
    """
    x = x_ref[...]                                             # [TB, V]
    # Two independent MXU contractions against x (no serial enc->dec dep).
    enc_ref[...] = (jnp.dot(x, we_ref[...],
                            preferred_element_type=jnp.float32)
                    + be_ref[...])
    dec_ref[...] = (jnp.dot(x, wf_ref[...],
                            preferred_element_type=jnp.float32)
                    + bf_ref[...])


@functools.partial(jax.jit, static_argnames=("block_b",))
def char_autoencoder(x, w_enc, b_enc, w_dec, b_dec, *, block_b=1024):
    """x: [B, V] f32; weights in PyTorch convention (W[out,in], b[out]).

    Returns (decoded [B, V], encoded [B, H]), matching the module's forward.
    """
    B, V = x.shape
    H = w_enc.shape[0]
    x = x.astype(jnp.float32)

    # --- one-time wrapper-side algebra / layout prep (tiny XLA ops) ---
    #   encoded = x @ We^T + b_enc
    #   decoded = encoded @ Wd^T + b_dec = x @ (We^T Wd^T) + (b_enc Wd^T + b_dec)
    we_t = w_enc.T.astype(jnp.float32)                               # [V, H]
    be2d = b_enc.astype(jnp.float32)[None, :]                        # [1, H]
    w_fused = (w_enc.T @ w_dec.T).astype(jnp.float32)                # [V, V]
    b_fused = (b_enc @ w_dec.T + b_dec).astype(jnp.float32)[None, :]  # [1, V]

    # --- batch tiling ---
    # TB multiple of 8; capped at 2048 rows (keeps the double-buffered
    # working set ~< 7 MiB, under v5e's 16 MiB scoped-VMEM default); when the
    # batch allows, cap so the grid has >= 2 steps (v7x has 2 TensorCores).
    TB = min(block_b, 2048, _round_up(B, 8))
    if B >= 16:
        TB = min(TB, _round_up(-(-B // 2), 8))
    TB = max(8, _round_up(TB, 8))
    Bp = _round_up(B, TB)
    if Bp != B:
        x = jnp.pad(x, ((0, Bp - B), (0, 0)))
    grid = (Bp // TB,)

    decoded, encoded = pl.pallas_call(
        _autoencoder_kernel,
        out_shape=(
            jax.ShapeDtypeStruct((Bp, V), jnp.float32),   # decoded
            jax.ShapeDtypeStruct((Bp, H), jnp.float32),   # encoded
        ),
        grid=grid,
        in_specs=[
            pl.BlockSpec((TB, V), lambda i: (i, 0)),   # x: streamed per tile
            pl.BlockSpec((V, H), lambda i: (0, 0)),    # We^T: VMEM-resident
            pl.BlockSpec((1, H), lambda i: (0, 0)),    # b_enc
            pl.BlockSpec((V, V), lambda i: (0, 0)),    # fused decoder weight
            pl.BlockSpec((1, V), lambda i: (0, 0)),    # fused decoder bias
        ],
        out_specs=(
            pl.BlockSpec((TB, V), lambda i: (i, 0)),   # decoded, exact width
            pl.BlockSpec((TB, H), lambda i: (i, 0)),   # encoded, exact width
        ),
        compiler_params=pltpu.CompilerParams(
            dimension_semantics=("parallel",)),
    )(x, we_t, be2d, w_fused, b_fused)

    if Bp != B:                       # only when batch padding was needed
        decoded = decoded[:B]
        encoded = encoded[:B]
    return decoded, encoded


def init_params(key):
    """Deterministic init mirroring nn.Linear shapes: W[out,in], b[out]."""
    k1, k2, k3, k4 = jax.random.split(key, 4)
    lim_e = 1.0 / jnp.sqrt(jnp.float32(VOCAB_SIZE))
    lim_d = 1.0 / jnp.sqrt(jnp.float32(HIDDEN_SIZE))
    w_enc = jax.random.uniform(k1, (HIDDEN_SIZE, VOCAB_SIZE),
                               jnp.float32, -lim_e, lim_e)
    b_enc = jax.random.uniform(k2, (HIDDEN_SIZE,), jnp.float32, -lim_e, lim_e)
    w_dec = jax.random.uniform(k3, (VOCAB_SIZE, HIDDEN_SIZE),
                               jnp.float32, -lim_d, lim_d)
    b_dec = jax.random.uniform(k4, (VOCAB_SIZE,), jnp.float32, -lim_d, lim_d)
    return w_enc, b_enc, w_dec, b_dec


if __name__ == "__main__":
    key = jax.random.PRNGKey(0)
    kx, kp = jax.random.split(key)

    batch = 64
    # Random one-hot character rows over the 27-char vocab.
    idx = jax.random.randint(kx, (batch,), 0, VOCAB_SIZE)
    x = jax.nn.one_hot(idx, VOCAB_SIZE, dtype=jnp.float32)   # [64, 27]

    w_enc, b_enc, w_dec, b_dec = init_params(kp)

    # block_b=16 -> 4 grid steps: exercises batch tiling + resident weights
    # at small shapes. (Default block_b=1024 for real workloads.)
    decoded, encoded = char_autoencoder(x, w_enc, b_enc, w_dec, b_dec,
                                        block_b=16)
    jax.block_until_ready((decoded, encoded))

    # Reference check in plain JAX (same math as the PyTorch forward).
    enc_ref = x @ w_enc.T + b_enc
    dec_ref = enc_ref @ w_dec.T + b_dec
    assert decoded.shape == (batch, VOCAB_SIZE)
    assert encoded.shape == (batch, HIDDEN_SIZE)
    assert jnp.allclose(encoded, enc_ref, atol=1e-4)
    assert jnp.allclose(decoded, dec_ref, atol=1e-4)

    print("KERNEL_OK")
</pallas_src>

<mosaic_0001>
module attributes {stable_mosaic.version = 11 : i64} {
  func.func @_autoencoder_kernel(%arg0: i32, %arg1: memref<16x27xf32, #tpu.memory_space<vmem>>, %arg2: memref<27x16xf32, #tpu.memory_space<vmem>>, %arg3: memref<1x16xf32, #tpu.memory_space<vmem>>, %arg4: memref<27x27xf32, #tpu.memory_space<vmem>>, %arg5: memref<1x27xf32, #tpu.memory_space<vmem>>, %arg6: memref<16x27xf32, #tpu.memory_space<vmem>>, %arg7: memref<16x16xf32, #tpu.memory_space<vmem>>) attributes {dimension_semantics = [#tpu.dimension_semantics<parallel>], iteration_bounds = array<i64: 4>, scalar_prefetch = 0 : i64, scratch_operands = 0 : i64, tpu.core_type = #tpu.core_type<tc>, window_params = [{transform_indices = @transform_0, window_bounds = array<i64: 16, 27>}, {pipeline_mode = #tpu.pipeline_mode<synchronous>, transform_indices = @transform_1, window_bounds = array<i64: 27, 16>}, {pipeline_mode = #tpu.pipeline_mode<synchronous>, transform_indices = @transform_2, window_bounds = array<i64: 1, 16>}, {pipeline_mode = #tpu.pipeline_mode<synchronous>, transform_indices = @transform_3, window_bounds = array<i64: 27, 27>}, {pipeline_mode = #tpu.pipeline_mode<synchronous>, transform_indices = @transform_4, window_bounds = array<i64: 1, 27>}, {transform_indices = @transform_5, window_bounds = array<i64: 16, 27>}, {transform_indices = @transform_6, window_bounds = array<i64: 16, 16>}]} {
    %c0 = arith.constant 0 : index
    %c0_0 = arith.constant 0 : index
    %0 = vector.load %arg1[%c0, %c0_0] : memref<16x27xf32, #tpu.memory_space<vmem>>, vector<16x27xf32>
    %c0_1 = arith.constant 0 : index
    %c0_2 = arith.constant 0 : index
    %1 = vector.load %arg2[%c0_1, %c0_2] : memref<27x16xf32, #tpu.memory_space<vmem>>, vector<27x16xf32>
    %cst = arith.constant dense<0.000000e+00> : vector<16x16xf32>
    %2 = tpu.matmul %0, %1, %cst {dimension_numbers = #tpu.dot_dimension_numbers<[1], [0], [0], [1], [0, 0, 1, 1], [], []>} : vector<16x27xf32>, vector<27x16xf32>, vector<16x16xf32> -> vector<16x16xf32>
    %c0_3 = arith.constant 0 : index
    %c0_4 = arith.constant 0 : index
    %3 = vector.load %arg3[%c0_3, %c0_4] : memref<1x16xf32, #tpu.memory_space<vmem>>, vector<1x16xf32>
    %4 = vector.broadcast %3 : vector<1x16xf32> to vector<16x16xf32>
    %5 = arith.addf %2, %4 : vector<16x16xf32>
    %c0_5 = arith.constant 0 : index
    %c0_6 = arith.constant 0 : index
    %6 = vector.load %arg7[%c0_5, %c0_6] : memref<16x16xf32, #tpu.memory_space<vmem>>, vector<16x16xf32>
    tpu.vector_store %arg7[%c0_5, %c0_6], %5 {strides = array<i32>} : memref<16x16xf32, #tpu.memory_space<vmem>>, vector<16x16xf32>,
    %c0_7 = arith.constant 0 : index
    %c0_8 = arith.constant 0 : index
    %7 = vector.load %arg4[%c0_7, %c0_8] : memref<27x27xf32, #tpu.memory_space<vmem>>, vector<27x27xf32>
    %cst_9 = arith.constant dense<0.000000e+00> : vector<16x27xf32>
    %8 = tpu.matmul %0, %7, %cst_9 {dimension_numbers = #tpu.dot_dimension_numbers<[1], [0], [0], [1], [0, 0, 1, 1], [], []>} : vector<16x27xf32>, vector<27x27xf32>, vector<16x27xf32> -> vector<16x27xf32>
    %c0_10 = arith.constant 0 : index
    %c0_11 = arith.constant 0 : index
    %9 = vector.load %arg5[%c0_10, %c0_11] : memref<1x27xf32, #tpu.memory_space<vmem>>, vector<1x27xf32>
    %10 = vector.broadcast %9 : vector<1x27xf32> to vector<16x27xf32>
    %11 = arith.addf %8, %10 : vector<16x27xf32>
    %c0_12 = arith.constant 0 : index
    %c0_13 = arith.constant 0 : index
    %12 = vector.load %arg6[%c0_12, %c0_13] : memref<16x27xf32, #tpu.memory_space<vmem>>, vector<16x27xf32>
    tpu.vector_store %arg6[%c0_12, %c0_13], %11 {strides = array<i32>} : memref<16x27xf32, #tpu.memory_space<vmem>>, vector<16x27xf32>,
    return
  }
  func.func @transform_0(%arg0: i32) -> (i32, i32) {
    %c0_i32 = arith.constant 0 : i32
    %c0_i32_0 = arith.constant 0 : i32
    return %arg0, %c0_i32 : i32, i32
  }
  func.func @transform_1(%arg0: i32) -> (i32, i32) {
    %c0_i32 = arith.constant 0 : i32
    %c0_i32_0 = arith.constant 0 : i32
    %c0_i32_1 = arith.constant 0 : i32
    return %c0_i32, %c0_i32_0 : i32, i32
  }
  func.func @transform_2(%arg0: i32) -> (i32, i32) {
    %c0_i32 = arith.constant 0 : i32
    %c0_i32_0 = arith.constant 0 : i32
    %c0_i32_1 = arith.constant 0 : i32
    return %c0_i32, %c0_i32_0 : i32, i32
  }
  func.func @transform_3(%arg0: i32) -> (i32, i32) {
    %c0_i32 = arith.constant 0 : i32
    %c0_i32_0 = arith.constant 0 : i32
    %c0_i32_1 = arith.constant 0 : i32
    return %c0_i32, %c0_i32_0 : i32, i32
  }
  func.func @transform_4(%arg0: i32) -> (i32, i32) {
    %c0_i32 = arith.constant 0 : i32
    %c0_i32_0 = arith.constant 0 : i32
    %c0_i32_1 = arith.constant 0 : i32
    return %c0_i32, %c0_i32_0 : i32, i32
  }
  func.func @transform_5(%arg0: i32) -> (i32, i32) {
    %c0_i32 = arith.constant 0 : i32
    %c0_i32_0 = arith.constant 0 : i32
    return %arg0, %c0_i32 : i32, i32
  }
  func.func @transform_6(%arg0: i32) -> (i32, i32) {
    %c0_i32 = arith.constant 0 : i32
    %c0_i32_0 = arith.constant 0 : i32
    return %arg0, %c0_i32 : i32, i32
  }
}

</mosaic_0001>

<llo_original>
// kernel: char_autoencoder.1
$region0: #{char_autoencoder.1}
  #allocation0 [shape = 'u32[]', space=smem, size = 0x4, offset = 0x4, fixed_abs, tag = 'smem constant byte address 0x4 - core index']
  #allocation1 [shape = 'u32[72,128]{1,0:T(1,128)}', space=vmem, size = 0x9000, scoped, tag = 'internal scratch']
  %s0 = inlined_call_operand.vmem [shape: f32[64,27], index: 0, kind: input, shape index: {}]
  %s1 = inlined_call_operand.vmem [shape: f32[27,16], index: 1, kind: input, shape index: {}]
  %s2 = inlined_call_operand.vmem [shape: f32[1,16], index: 2, kind: input, shape index: {}]
  %s3 = inlined_call_operand.vmem [shape: f32[27,27], index: 3, kind: input, shape index: {}]
  %s4 = inlined_call_operand.vmem [shape: f32[1,27], index: 4, kind: input, shape index: {}]
  %s5 = inlined_call_operand.vmem [shape: f32[64,27], index: 5, kind: output, shape index: {0}]
  %s6 = inlined_call_operand.vmem [shape: f32[64,16], index: 6, kind: output, shape index: {1}]
  %7 = xla_tuple %s5, %s6
  %s8 = sld [smem:[#allocation0]]
  $region61: #{char_autoencoder.1} parent=0
    _
  %s10 = ssub.s32 1, %s8
  %s11 = scalar_select 0, %s10, %s8
  loop: start=0, step=1, limit=6
  $region2: #{char_autoencoder.1} parent=0 // loop_pre_header
    _
  $region3: #{char_autoencoder.1} parent=0 // loop_header
    %s13 = sphi 0, %s17
    %p14 = scmp.ge.s32.totalorder %s13, 6
    %s23 = sphi 0, %s25
    %s26 = sphi 0, %s23
    %s27 = sphi 0, %s26
    %s43 = sphi 0, %s27
    %s47 = sphi 0, %s47
    %s49 = sphi 0, %s47
    %s50 = sphi 0, %s49
    %s64 = sphi 0, %s50
    %s68 = sphi 0, %s68
    %s70 = sphi 0, %s68
    %s71 = sphi 0, %s70
    %s85 = sphi 0, %s71
    %s89 = sphi 0, %s89
    %s91 = sphi 0, %s89
    %s92 = sphi 0, %s91
    %s106 = sphi 0, %s92
    %s110 = sphi 0, %s110
    %s112 = sphi 0, %s110
    %s113 = sphi 0, %s112
    %s127 = sphi 0, %s113
    %s133 = sphi 0, %s135
    %s136 = sphi 0, %s133
    %s137 = sphi 0, %s136
    %s153 = sphi 0, %s137
    %s159 = sphi 0, %s161
    %s162 = sphi 0, %s159
    %s163 = sphi 0, %s162
    %s179 = sphi 0, %s163
  $region4: #{char_autoencoder.1} parent=0 // loop_header_branch
    %16 = sbr.rel (%p14) target = $region8
  $region5: #{char_autoencoder.1} parent=0 // loop_body
    %s18 = ssub.s32 %s13, 1
    %s19 = ssub.s32 %s13, 2
    %s20 = sadd.s32 %s13, 1
    %s21 = ssub.s32 %s13, %s20
    %p22 = scmp.eq.s32.totalorder %s21, 0
    %s24 = sadd.s32 %s23, 1
    %s25 = scalar_select %p22, %s23, %s24
    %p28 = pneg %p22
    %p29 = scmp.eq.s32.totalorder %s13, 3
    %p30 = por %p28, %p29
    %p31 = scmp.ne.s32.totalorder %s23, %s26
    %p32 = scmp.eq.s32.totalorder %s13, 0
    %p33 = por %p31, %p32
    %p34 = scmp.ne.s32.totalorder %s23, %s26
    %p35 = scmp.eq.s32.totalorder %s18, 3
    %p36 = por %p34, %p35
    %p37 = scmp.ne.s32.totalorder %s26, %s27
    %p38 = scmp.eq.s32.totalorder %s18, 0
    %p39 = por %p37, %p38
    %p40 = scmp.ne.s32.totalorder %s26, %s27
    %p41 = scmp.eq.s32.totalorder %s19, 3
    %p42 = por %p40, %p41
    %p44 = scmp.ne.s32.totalorder %s27, %s43
    %p45 = scmp.eq.s32.totalorder %s19, 0
    %p46 = por %p44, %p45
    %s48 = sadd.s32 %s47, 1
    %p51 = scmp.eq.s32.totalorder %s13, 3
    %p52 = scmp.ne.s32.totalorder %s47, %s49
    %p53 = scmp.eq.s32.totalorder %s13, 0
    %p54 = por %p52, %p53
    %p55 = scmp.ne.s32.totalorder %s47, %s49
    %p56 = scmp.eq.s32.totalorder %s18, 3
    %p57 = por %p55, %p56
    %p58 = scmp.ne.s32.totalorder %s49, %s50
    %p59 = scmp.eq.s32.totalorder %s18, 0
    %p60 = por %p58, %p59
    %p61 = scmp.ne.s32.totalorder %s49, %s50
    %p62 = scmp.eq.s32.totalorder %s19, 3
    %p63 = por %p61, %p62
    %p65 = scmp.ne.s32.totalorder %s50, %s64
    %p66 = scmp.eq.s32.totalorder %s19, 0
    %p67 = por %p65, %p66
    %s69 = sadd.s32 %s68, 1
    %p72 = scmp.eq.s32.totalorder %s13, 3
    %p73 = scmp.ne.s32.totalorder %s68, %s70
    %p74 = scmp.eq.s32.totalorder %s13, 0
    %p75 = por %p73, %p74
    %p76 = scmp.ne.s32.totalorder %s68, %s70
    %p77 = scmp.eq.s32.totalorder %s18, 3
    %p78 = por %p76, %p77
    %p79 = scmp.ne.s32.totalorder %s70, %s71
    %p80 = scmp.eq.s32.totalorder %s18, 0
    %p81 = por %p79, %p80
    %p82 = scmp.ne.s32.totalorder %s70, %s71
    %p83 = scmp.eq.s32.totalorder %s19, 3
    %p84 = por %p82, %p83
    %p86 = scmp.ne.s32.totalorder %s71, %s85
    %p87 = scmp.eq.s32.totalorder %s19, 0
    %p88 = por %p86, %p87
    %s90 = sadd.s32 %s89, 1
    %p93 = scmp.eq.s32.totalorder %s13, 3
    %p94 = scmp.ne.s32.totalorder %s89, %s91
    %p95 = scmp.eq.s32.totalorder %s13, 0
    %p96 = por %p94, %p95
    %p97 = scmp.ne.s32.totalorder %s89, %s91
    %p98 = scmp.eq.s32.totalorder %s18, 3
    %p99 = por %p97, %p98
    %p100 = scmp.ne.s32.totalorder %s91, %s92
    %p101 = scmp.eq.s32.totalorder %s18, 0
    %p102 = por %p100, %p101
    %p103 = scmp.ne.s32.totalorder %s91, %s92
    %p104 = scmp.eq.s32.totalorder %s19, 3
    %p105 = por %p103, %p104
    %p107 = scmp.ne.s32.totalorder %s92, %s106
    %p108 = scmp.eq.s32.totalorder %s19, 0
    %p109 = por %p107, %p108
    %s111 = sadd.s32 %s110, 1
    %p114 = scmp.eq.s32.totalorder %s13, 3
    %p115 = scmp.ne.s32.totalorder %s110, %s112
    %p116 = scmp.eq.s32.totalorder %s13, 0
    %p117 = por %p115, %p116
    %p118 = scmp.ne.s32.totalorder %s110, %s112
    %p119 = scmp.eq.s32.totalorder %s18, 3
    %p120 = por %p118, %p119
    %p121 = scmp.ne.s32.totalorder %s112, %s113
    %p122 = scmp.eq.s32.totalorder %s18, 0
    %p123 = por %p121, %p122
    %p124 = scmp.ne.s32.totalorder %s112, %s113
    %p125 = scmp.eq.s32.totalorder %s19, 3
    %p126 = por %p124, %p125
    %p128 = scmp.ne.s32.totalorder %s113, %s127
    %p129 = scmp.eq.s32.totalorder %s19, 0
    %p130 = por %p128, %p129
    %s131 = ssub.s32 %s13, %s20
    %p132 = scmp.eq.s32.totalorder %s131, 0
    %s134 = sadd.s32 %s133, 1
    %s135 = scalar_select %p132, %s133, %s134
    %p138 = pneg %p132
    %p139 = scmp.eq.s32.totalorder %s13, 3
    %p140 = por %p138, %p139
    %p141 = scmp.ne.s32.totalorder %s133, %s136
    %p142 = scmp.eq.s32.totalorder %s13, 0
    %p143 = por %p141, %p142
    %p144 = scmp.ne.s32.totalorder %s133, %s136
    %p145 = scmp.eq.s32.totalorder %s18, 3
    %p146 = por %p144, %p145
    %p147 = scmp.ne.s32.totalorder %s136, %s137
    %p148 = scmp.eq.s32.totalorder %s18, 0
    %p149 = por %p147, %p148
    %p150 = scmp.ne.s32.totalorder %s136, %s137
    %p151 = scmp.eq.s32.totalorder %s19, 3
    %p152 = por %p150, %p151
    %p154 = scmp.ne.s32.totalorder %s137, %s153
    %p155 = scmp.eq.s32.totalorder %s19, 0
    %p156 = por %p154, %p155
    %s157 = ssub.s32 %s13, %s20
    %p158 = scmp.eq.s32.totalorder %s157, 0
    %s160 = sadd.s32 %s159, 1
    %s161 = scalar_select %p158, %s159, %s160
    %p164 = pneg %p158
    %p165 = scmp.eq.s32.totalorder %s13, 3
    %p166 = por %p164, %p165
    %p167 = scmp.ne.s32.totalorder %s159, %s162
    %p168 = scmp.eq.s32.totalorder %s13, 0
    %p169 = por %p167, %p168
    %p170 = scmp.ne.s32.totalorder %s159, %s162
    %p171 = scmp.eq.s32.totalorder %s18, 3
    %p172 = por %p170, %p171
    %p173 = scmp.ne.s32.totalorder %s162, %s163
    %p174 = scmp.eq.s32.totalorder %s18, 0
    %p175 = por %p173, %p174
    %p176 = scmp.ne.s32.totalorder %s162, %s163
    %p177 = scmp.eq.s32.totalorder %s19, 3
    %p178 = por %p176, %p177
    %p180 = scmp.ne.s32.totalorder %s163, %s179
    %p181 = scmp.eq.s32.totalorder %s19, 0
    %p182 = por %p180, %p181
    %p183 = scmp.le.s32.totalorder 1, %s13
    %p184 = scmp.lt.s32.totalorder %s13, 5
    %p185 = pnand %p183, %p184
    %p186 = pneg %p185
    // Predicated region
    $region9: #{char_autoencoder.1} parent=5 // pred_check
      _
    $region10: #{char_autoencoder.1} parent=5 // pred_check_branch
      %188 = sbr.rel (%p185) target = $region12
    $region11: #{char_autoencoder.1} parent=5 // pred_region
      %s189 = ssub.s32 %s13, 1
      // Predicated region
      $region13: #{char_autoencoder.1} parent=11 // pred_check
        %p190 = pneg %p60
      $region14: #{char_autoencoder.1} parent=11 // pred_check_branch
        %192 = sbr.rel (%p190) target = $region16
      $region15: #{char_autoencoder.1} parent=11 // pred_region
        _
      $region16: #{char_autoencoder.1} parent=11 // pred_fallthru
        _
      // Predicated region
      $region17: #{char_autoencoder.1} parent=11 // pred_check
        %p193 = pneg %p81
      $region18: #{char_autoencoder.1} parent=11 // pred_check_branch
        %195 = sbr.rel (%p193) target = $region20
      $region19: #{char_autoencoder.1} parent=11 // pred_region
        _
      $region20: #{char_autoencoder.1} parent=11 // pred_fallthru
        _
      // Predicated region
      $region21: #{char_autoencoder.1} parent=11 // pred_check
        %p196 = pneg %p102
      $region22: #{char_autoencoder.1} parent=11 // pred_check_branch
        %198 = sbr.rel (%p196) target = $region24
      $region23: #{char_autoencoder.1} parent=11 // pred_region
        _
      $region24: #{char_autoencoder.1} parent=11 // pred_fallthru
        _
      // Predicated region
      $region25: #{char_autoencoder.1} parent=11 // pred_check
        %p199 = pneg %p123
      $region26: #{char_autoencoder.1} parent=11 // pred_check_branch
        %201 = sbr.rel (%p199) target = $region28
      $region27: #{char_autoencoder.1} parent=11 // pred_region
        _
      $region28: #{char_autoencoder.1} parent=11 // pred_fallthru
        _
    $region12: #{char_autoencoder.1} parent=5 // pred_fallthru
      _
    %p202 = scmp.lt.s32.totalorder %s13, 4
    // Predicated region
    $region29: #{char_autoencoder.1} parent=5 // pred_check
      %p203 = pneg %p202
    $region30: #{char_autoencoder.1} parent=5 // pred_check_branch
      %205 = sbr.rel (%p203) target = $region32
    $region31: #{char_autoencoder.1} parent=5 // pred_region
      // Predicated region
      $region33: #{char_autoencoder.1} parent=31 // pred_check
        %p206 = pneg %p33
      $region34: #{char_autoencoder.1} parent=31 // pred_check_branch
        %208 = sbr.rel (%p206) target = $region36
      $region35: #{char_autoencoder.1} parent=31 // pred_region
        %s209 = smul.u32 2, %s13
        %p210 = scmp.lt.s32.totalorder %s209, 7
        %s211 = scalar_select %p210, %s209, 7
        %s212 = smul.addr %s211, 8
        %s213 = scalar_lea.vmem %s0, %s212
        %s214 = smul.u32 2, %s13
      $region36: #{char_autoencoder.1} parent=31 // pred_fallthru
        _
    $region32: #{char_autoencoder.1} parent=5 // pred_fallthru
      _
    %p215 = scmp.le.s32.totalorder 1, %s13
    %p216 = scmp.lt.s32.totalorder %s13, 5
    %p217 = pnand %p215, %p216
    %p218 = pneg %p217
    // Predicated region
    $region37: #{char_autoencoder.1} parent=5 // pred_check
      _
    $region38: #{char_autoencoder.1} parent=5 // pred_check_branch
      %220 = sbr.rel (%p217) target = $region40
    $region39: #{char_autoencoder.1} parent=5 // pred_region
      %s221 = ssub.s32 %s13, 1
      %s222 = smul.u32 2, %s18
      %p223 = scmp.lt.s32.totalorder %s222, 7
      %s224 = scalar_select %p223, %s222, 7
      %s225 = smul.addr %s224, 8
      %s226 = scalar_lea.vmem %s0, %s225
      %p227 = pneg %p39
      %p228 = pneg %p36
      %p229 = pneg %p60
      %p230 = pneg %p57
      %p231 = pneg %p81
      %p232 = pneg %p78
      %p233 = pneg %p102
      %p234 = pneg %p99
      %p235 = pneg %p123
      %p236 = pneg %p120
      %p237 = pneg %p149
      %p238 = pneg %p146
      %s239 = smul.u32 2, %s18
      %p240 = scmp.lt.s32.totalorder %s239, 7
      %s241 = scalar_select %p240, %s239, 7
      %s242 = smul.addr %s241, 8
      %s243 = scalar_lea.vmem %s5, %s242
      %p244 = pneg %p175
      %p245 = pneg %p172
      %s246 = smul.u32 2, %s18
      %p247 = scmp.lt.s32.totalorder %s246, 7
      %s248 = scalar_select %p247, %s246, 7
      %s249 = smul.addr %s248, 8
      %s250 = scalar_lea.vmem %s6, %s249
      %s251 = smul.u32 2, %s18
      %p252 = scmp.lt.s32.totalorder %s251, 7
      %s253 = scalar_select %p252, %s251, 7
      %s254 = smul.addr %s253, 8
      %s255 = scalar_lea.vmem %s0, %s254
      %s256 = smul.u32 2, %s18
      %s257 = smul.u32 2, %s18
      %p258 = scmp.lt.s32.totalorder %s257, 7
      %s259 = scalar_select %p258, %s257, 7
      %s260 = smul.addr %s259, 8
      %s261 = scalar_lea.vmem %s5, %s260
      %s262 = smul.u32 2, %s18
      %s263 = smul.u32 2, %s18
      %p264 = scmp.lt.s32.totalorder %s263, 7
      %s265 = scalar_select %p264, %s263, 7
      %s266 = smul.addr %s265, 8
      %s267 = scalar_lea.vmem %s6, %s266
      %s268 = smul.u32 2, %s18
      %v269 = vld [vmem:[%s255] sm:$0xff]
      %v270 = vld [vmem:[%s255 + $0x8] sm:$0xff]
      %v271 = vld [vmem:[%s1] sm:$0xff]
      %v272 = vld [vmem:[%s1 + $0x8] sm:$0xff]
      %v273 = vld [vmem:[%s1 + $0x10] sm:$0xff]
      %v274 = vld [vmem:[%s1 + $0x18] sm:$0x7]
      %v275 = vld [vmem:[%s2] sm:$0x1]
      %v277 = vperm.slane %v275, 0
      %vm279 = vcmask 220160
      %v281 = vsel %vm279, %v269, 0
      %v284 = vsel %vm279, %v270, 0
      %vm286 = vcmask 1042432
      %v288 = vsel %vm286, %v274, 0
      %290 = vmatpush.msra.mxu0 0.0
      %291 = vmatpush.msra.mxu0 0.0
      %292 = vmatpush.msra.mxu0 0.0
      %293 = vmatpush.msra.mxu0 0.0
      %294 = vmatpush.msra.mxu0 0.0
      %295 = vmatpush.msra.mxu0 0.0
      %296 = vmatpush.msra.mxu0 0.0
      %297 = vmatpush.msra.mxu0 0.0
      %298 = vmatpush.msra.mxu0 0.0
      %299 = vmatpush.msra.mxu0 0.0
      %300 = vmatpush.msra.mxu0 0.0
      %301 = vmatpush.msra.mxu0 0.0
      %302 = vmatpush.msra.mxu0 %v288
      %303 = vmatpush.msra.mxu0 %v273
      %304 = vmatpush.msra.mxu0 %v272
      %305 = vmatpush.msra.mxu0 %v271
      %306 = vmatmul.f32.gmra.mxu0 %v281
      %v307 = vpop.f32.mrf.mxu0
      %v308 = vadd.f32 %v277, %v307
      %309 = vmatmul.f32.gmra.mxu0 %v284
      %v310 = vpop.f32.mrf.mxu0
      %v311 = vadd.f32 %v277, %v310
      %312 = vdwg.mxu0
      %vm313 = vcmask 130048
      %314 = vst.msk [vmem:[%s267] sm:$0xff] %vm313, %v308
      %315 = vst.msk [vmem:[%s267 + $0x8] sm:$0xff] %vm313, %v311
      %v316 = vld [vmem:[%s3] sm:$0xff]
      %v317 = vld [vmem:[%s3 + $0x8] sm:$0xff]
      %v318 = vld [vmem:[%s3 + $0x10] sm:$0xff]
      %v319 = vld [vmem:[%s3 + $0x18] sm:$0x7]
      %v320 = vld [vmem:[%s4] sm:$0x1]
      %v322 = vperm.slane %v320, 0
      %v325 = vsel %vm286, %v319, 0
      %327 = vmatpush.msra.mxu0 0.0
      %328 = vmatpush.msra.mxu0 0.0
      %329 = vmatpush.msra.mxu0 0.0
      %330 = vmatpush.msra.mxu0 0.0
      %331 = vmatpush.msra.mxu0 0.0
      %332 = vmatpush.msra.mxu0 0.0
      %333 = vmatpush.msra.mxu0 0.0
      %334 = vmatpush.msra.mxu0 0.0
      %335 = vmatpush.msra.mxu0 0.0
      %336 = vmatpush.msra.mxu0 0.0
      %337 = vmatpush.msra.mxu0 0.0
      %338 = vmatpush.msra.mxu0 0.0
      %339 = vmatpush.msra.mxu0 %v325
      %340 = vmatpush.msra.mxu0 %v318
      %341 = vmatpush.msra.mxu0 %v317
      %342 = vmatpush.msra.mxu0 %v316
      %343 = vmatmul.f32.gmra.mxu0 %v281
      %v344 = vpop.f32.mrf.mxu0
      %v345 = vadd.f32 %v322, %v344
      %346 = vmatmul.f32.gmra.mxu0 %v284
      %v347 = vpop.f32.mrf.mxu0
      %v348 = vadd.f32 %v322, %v347
      %349 = vdwg.mxu0
      %350 = vst.msk [vmem:[%s261] sm:$0xff] %vm279, %v345
      %351 = vst.msk [vmem:[%s261 + $0x8] sm:$0xff] %vm279, %v348
      %s352 = smul.u32 2, %s18
      %p353 = scmp.lt.s32.totalorder %s352, 7
      %s354 = scalar_select %p353, %s352, 7
      %s355 = smul.addr %s354, 8
      %s356 = scalar_lea.vmem %s5, %s355
      %s357 = smul.u32 2, %s18
      %p358 = scmp.lt.s32.totalorder %s357, 7
      %s359 = scalar_select %p358, %s357, 7
      %s360 = smul.addr %s359, 8
      %s361 = scalar_lea.vmem %s6, %s360
      // Predicated region
      $region41: #{char_autoencoder.1} parent=39 // pred_check
        %p362 = pneg %p146
      $region42: #{char_autoencoder.1} parent=39 // pred_check_branch
        %364 = sbr.rel (%p362) target = $region44
      $region43: #{char_autoencoder.1} parent=39 // pred_region
        %s365 = smul.u32 2, %s18
      $region44: #{char_autoencoder.1} parent=39 // pred_fallthru
        _
      // Predicated region
      $region45: #{char_autoencoder.1} parent=39 // pred_check
        %p366 = pneg %p172
      $region46: #{char_autoencoder.1} parent=39 // pred_check_branch
        %368 = sbr.rel (%p366) target = $region48
      $region47: #{char_autoencoder.1} parent=39 // pred_region
        %s369 = smul.u32 2, %s18
      $region48: #{char_autoencoder.1} parent=39 // pred_fallthru
        _
    $region40: #{char_autoencoder.1} parent=5 // pred_fallthru
      _
    %p370 = scmp.le.s32.totalorder 2, %s13
    // Predicated region
    $region49: #{char_autoencoder.1} parent=5 // pred_check
      %p371 = pneg %p370
    $region50: #{char_autoencoder.1} parent=5 // pred_check_branch
      %373 = sbr.rel (%p371) target = $region52
    $region51: #{char_autoencoder.1} parent=5 // pred_region
      %s374 = ssub.s32 %s13, 2
      // Predicated region
      $region53: #{char_autoencoder.1} parent=51 // pred_check
        %p375 = pneg %p152
      $region54: #{char_autoencoder.1} parent=51 // pred_check_branch
        %377 = sbr.rel (%p375) target = $region56
      $region55: #{char_autoencoder.1} parent=51 // pred_region
        %s378 = smul.u32 2, %s19
        %p379 = scmp.lt.s32.totalorder %s378, 7
        %s380 = scalar_select %p379, %s378, 7
        %s381 = smul.addr %s380, 8
        %s382 = scalar_lea.vmem %s5, %s381
      $region56: #{char_autoencoder.1} parent=51 // pred_fallthru
        _
      // Predicated region
      $region57: #{char_autoencoder.1} parent=51 // pred_check
        %p383 = pneg %p178
      $region58: #{char_autoencoder.1} parent=51 // pred_check_branch
        %385 = sbr.rel (%p383) target = $region60
      $region59: #{char_autoencoder.1} parent=51 // pred_region
        %s386 = smul.u32 2, %s19
        %p387 = scmp.lt.s32.totalorder %s386, 7
        %s388 = scalar_select %p387, %s386, 7
        %s389 = smul.addr %s388, 8
        %s390 = scalar_lea.vmem %s6, %s389
      $region60: #{char_autoencoder.1} parent=51 // pred_fallthru
        _
    $region52: #{char_autoencoder.1} parent=5 // pred_fallthru
      _
  $region6: #{char_autoencoder.1} parent=0 // loop_footer
    %s17 = sadd.s32 1, %s13
  $region7: #{char_autoencoder.1} parent=0 // loop_footer_branch
    %12 = sbr.rel target = $region3
  $region8: #{char_autoencoder.1} parent=0 // loop_exit
    _

</llo_original>
